<compile_context>
chip_gen: v6e
topology: v6e:2x2x1
jax: 0.10.0
libtpu: 0.0.40
codegen_flags: <defaults>
</compile_context>

<pallas_src>
import functools

import jax
import jax.numpy as jnp
from jax import lax
from jax.experimental import pallas as pl
from jax.experimental.pallas import tpu as pltpu


def _round_up(v, m):
    return (v + m - 1) // m * m


def _linear_filter_kernel(x_ref, w_ref, b_ref, out_ref, mask_ref, *,
                          n_total, tn, n_ragged):
    j = pl.program_id(1)

    # Wrapped module: out = x @ W + b  (MXU matmul, f32 accumulate), stored in
    # the module's natural output dtype (bf16 halves the dominant writeback).
    acc = jnp.dot(x_ref[...], w_ref[...], preferred_element_type=jnp.float32)
    out = (acc + b_ref[...].astype(jnp.float32)).astype(out_ref.dtype)
    out_ref[...] = out

    # _2d_filter: selected = out.isfinite().all(dim=1), checked on the actual
    # output dtype.  VPU compare + XLU lane-max reduce (free slots next to the
    # MXU matmul) instead of a full (TM,N) MXU einsum.
    bad = (~jnp.isfinite(out)).astype(jnp.float32)              # (TM, TN)
    if n_ragged:
        # Last N tile is partial: ignore out-of-bounds columns (garbage reads).
        col = lax.broadcasted_iota(jnp.int32, bad.shape, 1) + j * tn
        bad = jnp.where(col < n_total, bad, 0.0)
    bad_col = jnp.max(bad, axis=-1, keepdims=True)              # (TM, 1)

    # Tiny K=1 dot relayouts the per-row flag (TM,1) -> lane-dense (1,TM) so
    # the mask store stays a full-width vst; no (TM,N) transpose is needed.
    bad_row = lax.dot_general(
        jnp.ones((1, 1), jnp.float32), bad_col,
        dimension_numbers=(((1,), (1,)), ((), ())),
        preferred_element_type=jnp.float32)                     # (1, TM)
    tile_ok = (bad_row == 0.0).astype(jnp.int32)

    # Accumulate the row mask across N tiles (mask block is resident over j).
    @pl.when(j == 0)
    def _():
        mask_ref[...] = jnp.ones_like(mask_ref)
    mask_ref[...] = mask_ref[...] * tile_ok


def linear_filter_mask(x, w, b, *, tm_max=1024):
    """out = x @ w + b ; selected[i] = isfinite(out[i]).all(). Jit-friendly."""
    B, K = x.shape
    Kw, N = w.shape
    assert Kw == K
    out_dtype = x.dtype

    x_item = jnp.dtype(x.dtype).itemsize
    w_item = jnp.dtype(w.dtype).itemsize
    o_item = jnp.dtype(out_dtype).itemsize

    # Per-TensorCore VMEM budget (v5e/v6e: 128 MiB, v7x: 64 MiB), with headroom
    # for the compiler's internal scratch.
    try:
        vmem_cap = int(pltpu.get_tpu_info().vmem_capacity_bytes)
    except Exception:
        vmem_cap = 64 << 20                          # v7x-safe fallback
    vmem_budget = int(vmem_cap * 0.8)

    # ---- N tiling: keep W/b resident when they fit, otherwise tile N. ----
    # W/b counted twice: Pallas double-buffers inputs even with constant maps.
    def w_bytes(tn):
        return 2 * (K * tn * w_item + tn * 4)

    min_act = 2 * (128 * K * x_item + 128 * 128 * o_item) + 2 * 128 * 4
    if w_bytes(N) + min_act <= vmem_budget:
        TN = N
    else:
        TN = 128
        while 2 * TN < N and w_bytes(2 * TN) + min_act <= vmem_budget:
            TN *= 2
    GN = pl.cdiv(N, TN)
    n_ragged = (N % TN) != 0
    # TODO(synk): no K grid axis / f32 acc scratch yet; extremely large K (where
    # a single (TM,K) x-tile blows the VMEM budget) is not handled.

    # ---- batch tiling: biggest tile that fits VMEM (HBM roofline), but keep
    # >= ~4 batch tiles so "parallel" shards across v7x's two TensorCores, and
    # a multiple of 128 so the lane-dense (1,TM) mask block stays aligned. ----
    def act_bytes(tm):
        return 2 * (tm * K * x_item + tm * TN * o_item) + 2 * tm * 4

    tm_cap = 128
    while 2 * tm_cap <= tm_max and act_bytes(2 * tm_cap) + w_bytes(TN) <= vmem_budget:
        tm_cap *= 2
    TM = min(tm_cap, max(128, _round_up(pl.cdiv(B, 4), 128)))
    GB = pl.cdiv(B, TM)

    vmem_need = act_bytes(TM) + w_bytes(TN)
    vmem_limit = int(max(32 << 20, min(vmem_budget, vmem_need * 3 // 2 + (4 << 20))))

    cost = pl.CostEstimate(
        flops=2 * B * K * N,
        transcendentals=0,
        bytes_accessed=(B * K * x_item + GB * K * N * w_item + N * 4
                        + B * N * o_item + B * 4),
    )

    kernel = functools.partial(
        _linear_filter_kernel, n_total=N, tn=TN, n_ragged=n_ragged)

    # No pre-padding of x: ragged edge blocks read unspecified OOB data, but
    # those rows/columns are either discarded on writeback or masked in-kernel.
    out, mask = pl.pallas_call(
        kernel,
        out_shape=(
            jax.ShapeDtypeStruct((B, N), out_dtype),
            jax.ShapeDtypeStruct((1, B), jnp.int32),      # lane-dense row mask
        ),
        grid=(GB, GN),
        in_specs=[
            pl.BlockSpec((TM, K), lambda i, j: (i, 0)),   # x: tiled over batch
            pl.BlockSpec((K, TN), lambda i, j: (0, j)),   # W: resident / N-tiled
            pl.BlockSpec((1, TN), lambda i, j: (0, j)),   # b
        ],
        out_specs=(
            pl.BlockSpec((TM, TN), lambda i, j: (i, j)),
            pl.BlockSpec((1, TM), lambda i, j: (0, i)),   # resident across j
        ),
        compiler_params=pltpu.CompilerParams(
            dimension_semantics=("parallel", "arbitrary"),
            vmem_limit_bytes=vmem_limit,
        ),
        cost_estimate=cost,
    )(x, w, b.reshape(1, N))

    selected = mask[0].astype(bool)
    return out, selected


def filter_inf_n_nan_linear(x, w, b):
    """FilterInfNNan(Linear).forward: returns (filtered_rows, selected)."""
    out, selected = linear_filter_mask(x, w, b)
    # TODO(synk): torch's `out[selected]` is dynamically shaped; the boolean row
    # gather stays in eager JAX (not jittable). Jit users should consume
    # (out, selected) from linear_filter_mask directly.
    filtered = out[selected]
    return filtered, selected


if __name__ == "__main__":
    key = jax.random.PRNGKey(0)
    kx, kw, kb = jax.random.split(key, 3)

    B, K, N = 8, 32, 128  # batch, in_features, out_features

    # Deterministic "module" parameters (a Linear layer).
    w = jax.random.normal(kw, (K, N), dtype=jnp.float32) * 0.05
    b = jax.random.normal(kb, (N,), dtype=jnp.float32) * 0.01

    # Deterministic input; poison two rows so the wrapped module's output
    # contains non-finite values and the filter actually drops rows.
    x = jax.random.normal(kx, (B, K), dtype=jnp.float32)
    x = x.at[1, 0].set(jnp.inf)
    x = x.at[5, 3].set(jnp.nan)

    filtered, selected = filter_inf_n_nan_linear(x, w, b)
    jax.block_until_ready(filtered)
    jax.block_until_ready(selected)

    # Reference check in plain JAX (same semantics as the torch module).
    ref_out = x @ w + b
    ref_sel = jnp.all(jnp.isfinite(ref_out), axis=1)
    assert bool(jnp.array_equal(selected, ref_sel))
    assert filtered.shape == (int(ref_sel.sum()), N)
    assert bool(jnp.allclose(filtered, ref_out[ref_sel], atol=1e-5))
    assert bool(jnp.all(jnp.isfinite(filtered)))

    print("KERNEL_OK")
</pallas_src>

<mosaic_0001>
module attributes {stable_mosaic.version = 11 : i64} {
  func.func @_linear_filter_kernel(%arg0: i32, %arg1: i32, %arg2: memref<128x32xf32, #tpu.memory_space<vmem>>, %arg3: memref<32x128xf32, #tpu.memory_space<vmem>>, %arg4: memref<1x128xf32, #tpu.memory_space<vmem>>, %arg5: memref<128x128xf32, #tpu.memory_space<vmem>>, %arg6: memref<1x128xi32, #tpu.memory_space<vmem>>) attributes {dimension_semantics = [#tpu.dimension_semantics<parallel>, #tpu.dimension_semantics<arbitrary>], iteration_bounds = array<i64: 1, 1>, scalar_prefetch = 0 : i64, scratch_operands = 0 : i64, tpu.core_type = #tpu.core_type<tc>, window_params = [{transform_indices = @transform_0, window_bounds = array<i64: 128, 32>}, {transform_indices = @transform_1, window_bounds = array<i64: 32, 128>}, {transform_indices = @transform_2, window_bounds = array<i64: 1, 128>}, {transform_indices = @transform_3, window_bounds = array<i64: 128, 128>}, {transform_indices = @transform_4, window_bounds = array<i64: 1, 128>}]} {
    %c0 = arith.constant 0 : index
    %c0_0 = arith.constant 0 : index
    %0 = vector.load %arg2[%c0, %c0_0] : memref<128x32xf32, #tpu.memory_space<vmem>>, vector<128x32xf32>
    %c0_1 = arith.constant 0 : index
    %c0_2 = arith.constant 0 : index
    %1 = vector.load %arg3[%c0_1, %c0_2] : memref<32x128xf32, #tpu.memory_space<vmem>>, vector<32x128xf32>
    %cst = arith.constant dense<0.000000e+00> : vector<128x128xf32>
    %2 = tpu.matmul %0, %1, %cst {dimension_numbers = #tpu.dot_dimension_numbers<[1], [0], [0], [1], [0, 0, 1, 1], [], []>} : vector<128x32xf32>, vector<32x128xf32>, vector<128x128xf32> -> vector<128x128xf32>
    %c0_3 = arith.constant 0 : index
    %c0_4 = arith.constant 0 : index
    %3 = vector.load %arg4[%c0_3, %c0_4] : memref<1x128xf32, #tpu.memory_space<vmem>>, vector<1x128xf32>
    %4 = vector.broadcast %3 : vector<1x128xf32> to vector<128x128xf32>
    %5 = arith.addf %2, %4 : vector<128x128xf32>
    %c0_5 = arith.constant 0 : index
    %c0_6 = arith.constant 0 : index
    %6 = vector.load %arg5[%c0_5, %c0_6] : memref<128x128xf32, #tpu.memory_space<vmem>>, vector<128x128xf32>
    tpu.vector_store %arg5[%c0_5, %c0_6], %5 {strides = array<i32>} : memref<128x128xf32, #tpu.memory_space<vmem>>, vector<128x128xf32>,
    %7 = tpu.weird %5 : vector<128x128xf32> -> vector<128x128xi1>
    %cst_7 = arith.constant dense<true> : vector<128x128xi1>
    %8 = arith.xori %7, %cst_7 : vector<128x128xi1>
    %cst_8 = arith.constant dense<true> : vector<128x128xi1>
    %9 = arith.xori %8, %cst_8 : vector<128x128xi1>
    %10 = arith.extui %9 : vector<128x128xi1> to vector<128x128xi32>
    %11 = arith.sitofp %10 : vector<128x128xi32> to vector<128x128xf32>
    %cst_9 = arith.constant dense<0xFF800000> : vector<128xf32>
    %12 = vector.multi_reduction <maximumf>, %11, %cst_9 [1] : vector<128x128xf32> to vector<128xf32>
    %13 = vector.shape_cast %12 : vector<128xf32> to vector<128x1xf32>
    %cst_10 = arith.constant 1.000000e+00 : f32
    %14 = vector.broadcast %cst_10 : f32 to vector<1x1xf32>
    %cst_11 = arith.constant dense<0.000000e+00> : vector<1x128xf32>
    %15 = tpu.matmul %14, %13, %cst_11 {dimension_numbers = #tpu.dot_dimension_numbers<[1], [1], [0], [0], [0, 0, 1, 0], [], []>} : vector<1x1xf32>, vector<128x1xf32>, vector<1x128xf32> -> vector<1x128xf32>
    %cst_12 = arith.constant 0.000000e+00 : f32
    %16 = vector.broadcast %cst_12 : f32 to vector<1x128xf32>
    %17 = arith.cmpf oeq, %15, %16 : vector<1x128xf32>
    %18 = arith.extui %17 : vector<1x128xi1> to vector<1x128xi32>
    %c0_i32 = arith.constant 0 : i32
    %19 = arith.cmpi eq, %arg1, %c0_i32 : i32
    %20 = arith.extui %19 : i1 to i32
    %c0_i32_13 = arith.constant 0 : i32
    %21 = arith.cmpi ne, %20, %c0_i32_13 : i32
    scf.if %21 {
      %c1_i32 = arith.constant 1 : i32
      %25 = vector.broadcast %c1_i32 : i32 to vector<1x128xi32>
      %c0_18 = arith.constant 0 : index
      %c0_19 = arith.constant 0 : index
      %26 = vector.load %arg6[%c0_18, %c0_19] : memref<1x128xi32, #tpu.memory_space<vmem>>, vector<1x128xi32>
      tpu.vector_store %arg6[%c0_18, %c0_19], %25 {strides = array<i32>} : memref<1x128xi32, #tpu.memory_space<vmem>>, vector<1x128xi32>,
    } else {
    }
    %c0_14 = arith.constant 0 : index
    %c0_15 = arith.constant 0 : index
    %22 = vector.load %arg6[%c0_14, %c0_15] : memref<1x128xi32, #tpu.memory_space<vmem>>, vector<1x128xi32>
    %23 = arith.muli %22, %18 : vector<1x128xi32>
    %c0_16 = arith.constant 0 : index
    %c0_17 = arith.constant 0 : index
    %24 = vector.load %arg6[%c0_16, %c0_17] : memref<1x128xi32, #tpu.memory_space<vmem>>, vector<1x128xi32>
    tpu.vector_store %arg6[%c0_16, %c0_17], %23 {strides = array<i32>} : memref<1x128xi32, #tpu.memory_space<vmem>>, vector<1x128xi32>,
    return
  }
  func.func @transform_0(%arg0: i32, %arg1: i32) -> (i32, i32) {
    %c0_i32 = arith.constant 0 : i32
    %c0_i32_0 = arith.constant 0 : i32
    return %arg0, %c0_i32 : i32, i32
  }
  func.func @transform_1(%arg0: i32, %arg1: i32) -> (i32, i32) {
    %c0_i32 = arith.constant 0 : i32
    %c0_i32_0 = arith.constant 0 : i32
    return %c0_i32, %arg1 : i32, i32
  }
  func.func @transform_2(%arg0: i32, %arg1: i32) -> (i32, i32) {
    %c0_i32 = arith.constant 0 : i32
    %c0_i32_0 = arith.constant 0 : i32
    return %c0_i32, %arg1 : i32, i32
  }
  func.func @transform_3(%arg0: i32, %arg1: i32) -> (i32, i32) {
    %c0_i32 = arith.constant 0 : i32
    return %arg0, %arg1 : i32, i32
  }
  func.func @transform_4(%arg0: i32, %arg1: i32) -> (i32, i32) {
    %c0_i32 = arith.constant 0 : i32
    %c0_i32_0 = arith.constant 0 : i32
    return %c0_i32, %arg0 : i32, i32
  }
}

</mosaic_0001>

<llo_original>
// kernel: tpu_custom_call.1
$region0: #{tpu_custom_call.1}
  #allocation0 [shape = 'u32[]', space=smem, size = 0x4, offset = 0x4, fixed_abs, tag = 'smem constant byte address 0x4 - core index']
  #allocation1 [shape = 'u32[144,128]{1,0:T(1,128)}', space=vmem, size = 0x12000, scoped, tag = 'internal scratch']
  %s0 = inlined_call_operand.hbm [shape: f32[8,32], index: 0, kind: input, shape index: {}]
  %s1 = inlined_call_operand.hbm [shape: f32[32,128], index: 1, kind: input, shape index: {}]
  %s2 = inlined_call_operand.vmem [shape: f32[1,128], index: 2, kind: input, shape index: {}]
  %s3 = inlined_call_operand.hbm [shape: f32[8,128], index: 3, kind: output, shape index: {0}]
  %s4 = inlined_call_operand.hbm [shape: s32[1,8], index: 4, kind: output, shape index: {1}]
  %5 = xla_tuple %s3, %s4
  %s6 = sld [smem:[#allocation0]]
  $region42: #{tpu_custom_call.1} parent=0
    _
  %s8 = ssub.s32 1, %s6
  %s9 = scalar_select 0, %s8, %s6
  $region1: #{tpu_custom_call.1} parent=0
    #allocation2 [shape = 'u8[65536]{0}', space=vmem, size = 0x10000, scoped, tag = 'input window, operand 0, single buffered']
    #allocation3 [shape = 's32[1]{0}', space=sflag, size = 0x4, scoped, tag = 'scoped memory for tpu_custom_call.1']
    #allocation4 [shape = 's32[1]{0}', space=sflag, size = 0x4, scoped, tag = 'scoped memory for tpu_custom_call.1']
    #allocation5 [shape = 'u8[16384]{0}', space=vmem, size = 0x4000, scoped, tag = 'input window, operand 1, single buffered']
    #allocation6 [shape = 's32[1]{0}', space=sflag, size = 0x4, scoped, tag = 'scoped memory for tpu_custom_call.1']
    #allocation7 [shape = 'u8[65536]{0}', space=vmem, size = 0x10000, scoped, tag = 'output window, operand 0, single buffered']
    #allocation8 [shape = 'u8[512]{0}', space=vmem, size = 0x400, scoped, tag = 'output window, operand 1, single buffered']
    #allocation9 [shape = 's32[1]{0}', space=sflag, size = 0x4, scoped, tag = 'scoped memory for tpu_custom_call.1']
    %10 = vsyncpa [#allocation3], 0
    %11 = vsyncpa [#allocation6], 0
    %12 = vsyncpa [#allocation4], 0
    %13 = vsyncpa [#allocation9], 0
    // Predicated region
    $region2: #{tpu_custom_call.1} parent=1 // pred_check
      _
    $region3: #{tpu_custom_call.1} parent=1 // pred_check_branch
      %15 = sbr.rel (0) target = $region5
    $region4: #{tpu_custom_call.1} parent=1 // pred_region
      %s17 = ssub.s32 2048, 128
      %18 = vsyncadd [#allocation3], %s17
      %s19 = sshll.u32 [#allocation2], 4
      %s20 = int_to_ptr.vmem [resolvable:$true] %s19
      %25 = dma.hbm_to_vmem [thread:$0]  %s0, 128, %s20, [#allocation3], 128, 128, 8
    $region5: #{tpu_custom_call.1} parent=1 // pred_fallthru
      _
    // Predicated region
    $region6: #{tpu_custom_call.1} parent=1 // pred_check
      _
    $region7: #{tpu_custom_call.1} parent=1 // pred_check_branch
      %27 = sbr.rel (0) target = $region9
    $region8: #{tpu_custom_call.1} parent=1 // pred_region
      %s29 = ssub.s32 512, 512
      %30 = vsyncadd [#allocation6], %s29
      %s31 = sshll.u32 [#allocation5], 4
      %s32 = int_to_ptr.vmem [resolvable:$true] %s31
      %37 = dma.hbm_to_vmem [thread:$0]  %s1, 512, %s32, [#allocation6], 128, 128, 8
    $region9: #{tpu_custom_call.1} parent=1 // pred_fallthru
      _
    // Predicated region
    $region10: #{tpu_custom_call.1} parent=1 // pred_check
      _
    $region11: #{tpu_custom_call.1} parent=1 // pred_check_branch
      %39 = sbr.rel (0) target = $region13
    $region12: #{tpu_custom_call.1} parent=1 // pred_region
      _
    $region13: #{tpu_custom_call.1} parent=1 // pred_fallthru
      _
    // Predicated region
    $region14: #{tpu_custom_call.1} parent=1 // pred_check
      _
    $region15: #{tpu_custom_call.1} parent=1 // pred_check_branch
      %41 = sbr.rel (0) target = $region17
    $region16: #{tpu_custom_call.1} parent=1 // pred_region
      %42 = dma.done [#allocation3], 2048
    $region17: #{tpu_custom_call.1} parent=1 // pred_fallthru
      _
    // Predicated region
    $region18: #{tpu_custom_call.1} parent=1 // pred_check
      _
    $region19: #{tpu_custom_call.1} parent=1 // pred_check_branch
      %44 = sbr.rel (0) target = $region21
    $region20: #{tpu_custom_call.1} parent=1 // pred_region
      %45 = dma.done [#allocation6], 512
    $region21: #{tpu_custom_call.1} parent=1 // pred_fallthru
      _
    %v46 = vld [vmem:[#allocation2] sm:$0xff]
    %v47 = vld [vmem:[#allocation2 + $0x8] sm:$0xff]
    %v48 = vld [vmem:[#allocation2 + $0x10] sm:$0xff]
    %v49 = vld [vmem:[#allocation2 + $0x18] sm:$0xff]
    %v50 = vld [vmem:[#allocation2 + $0x20] sm:$0xff]
    %v51 = vld [vmem:[#allocation2 + $0x28] sm:$0xff]
    %v52 = vld [vmem:[#allocation2 + $0x30] sm:$0xff]
    %v53 = vld [vmem:[#allocation2 + $0x38] sm:$0xff]
    %v54 = vld [vmem:[#allocation2 + $0x40] sm:$0xff]
    %v55 = vld [vmem:[#allocation2 + $0x48] sm:$0xff]
    %v56 = vld [vmem:[#allocation2 + $0x50] sm:$0xff]
    %v57 = vld [vmem:[#allocation2 + $0x58] sm:$0xff]
    %v58 = vld [vmem:[#allocation2 + $0x60] sm:$0xff]
    %v59 = vld [vmem:[#allocation2 + $0x68] sm:$0xff]
    %v60 = vld [vmem:[#allocation2 + $0x70] sm:$0xff]
    %v61 = vld [vmem:[#allocation2 + $0x78] sm:$0xff]
    %v62 = vld [vmem:[#allocation5] sm:$0xff]
    %v63 = vld [vmem:[#allocation5 + $0x8] sm:$0xff]
    %v64 = vld [vmem:[#allocation5 + $0x10] sm:$0xff]
    %v65 = vld [vmem:[#allocation5 + $0x18] sm:$0xff]
    %v66 = vld [vmem:[%s2] sm:$0x1]
    %v68 = vlaneseq
    %v69 = vshrl.u32 %v68, 7
    %v70 = vsub.s32 0, %v69
    %v71 = vrot.slane %v66, %v70
    %vm73 = vcmask 261120
    %v75 = vsel %vm73, %v46, 0
    %v78 = vsel %vm73, %v47, 0
    %v81 = vsel %vm73, %v48, 0
    %v84 = vsel %vm73, %v49, 0
    %v87 = vsel %vm73, %v50, 0
    %v90 = vsel %vm73, %v51, 0
    %v93 = vsel %vm73, %v52, 0
    %v96 = vsel %vm73, %v53, 0
    %v99 = vsel %vm73, %v54, 0
    %v102 = vsel %vm73, %v55, 0
    %v105 = vsel %vm73, %v56, 0
    %v108 = vsel %vm73, %v57, 0
    %v111 = vsel %vm73, %v58, 0
    %v114 = vsel %vm73, %v59, 0
    %v117 = vsel %vm73, %v60, 0
    %v120 = vsel %vm73, %v61, 0
    %122 = vmatprep.subr.mxu0 0.0
    %123 = vmatpush1.msra.mxu0 0.0
    %124 = vmatprep.subr.mxu0 0.0
    %125 = vmatpush1.msra.mxu0 0.0
    %126 = vmatprep.subr.mxu0 0.0
    %127 = vmatpush1.msra.mxu0 0.0
    %128 = vmatprep.subr.mxu0 0.0
    %129 = vmatpush1.msra.mxu0 0.0
    %130 = vmatprep.subr.mxu0 0.0
    %131 = vmatpush1.msra.mxu0 0.0
    %132 = vmatprep.subr.mxu0 0.0
    %133 = vmatpush1.msra.mxu0 0.0
    %134 = vmatprep.subr.mxu0 0.0
    %135 = vmatpush1.msra.mxu0 0.0
    %136 = vmatprep.subr.mxu0 0.0
    %137 = vmatpush1.msra.mxu0 0.0
    %138 = vmatprep.subr.mxu0 0.0
    %139 = vmatpush1.msra.mxu0 0.0
    %140 = vmatprep.subr.mxu0 0.0
    %141 = vmatpush1.msra.mxu0 0.0
    %142 = vmatprep.subr.mxu0 0.0
    %143 = vmatpush1.msra.mxu0 0.0
    %144 = vmatprep.subr.mxu0 0.0
    %145 = vmatpush1.msra.mxu0 0.0
    %146 = vmatprep.subr.mxu0 0.0
    %147 = vmatpush1.msra.mxu0 %v65
    %148 = vmatprep.subr.mxu0 0.0
    %149 = vmatpush1.msra.mxu0 %v64
    %150 = vmatprep.subr.mxu0 0.0
    %151 = vmatpush1.msra.mxu0 %v63
    %152 = vmatprep.subr.mxu0 0.0
    %153 = vmatpush1.msra.mxu0 %v62
    %154 = vmatprep.subr.mxu0 0.0
    %155 = vmatpush2.msra.mxu0 0.0
    %156 = vmatprep.subr.mxu0 0.0
    %157 = vmatpush2.msra.mxu0 0.0
    %158 = vmatprep.subr.mxu0 0.0
    %159 = vmatpush2.msra.mxu0 0.0
    %160 = vmatprep.subr.mxu0 0.0
    %161 = vmatpush2.msra.mxu0 0.0
    %162 = vmatprep.subr.mxu0 0.0
    %163 = vmatpush2.msra.mxu0 0.0
    %164 = vmatprep.subr.mxu0 0.0
    %165 = vmatpush2.msra.mxu0 0.0
    %166 = vmatprep.subr.mxu0 0.0
    %167 = vmatpush2.msra.mxu0 0.0
    %168 = vmatprep.subr.mxu0 0.0
    %169 = vmatpush2.msra.mxu0 0.0
    %170 = vmatprep.subr.mxu0 0.0
    %171 = vmatpush2.msra.mxu0 0.0
    %172 = vmatprep.subr.mxu0 0.0
    %173 = vmatpush2.msra.mxu0 0.0
    %174 = vmatprep.subr.mxu0 0.0
    %175 = vmatpush2.msra.mxu0 0.0
    %176 = vmatprep.subr.mxu0 0.0
    %177 = vmatpush2.msra.mxu0 0.0
    %178 = vmatprep.subr.mxu0 0.0
    %179 = vmatpush2.msra.mxu0 0.0
    %180 = vmatprep.subr.mxu0 0.0
    %181 = vmatpush2.msra.mxu0 0.0
    %182 = vmatprep.subr.mxu0 0.0
    %183 = vmatpush2.msra.mxu0 0.0
    %184 = vmatprep.subr.mxu0 0.0
    %185 = vmatpush2.msra.mxu0 0.0
    %186 = vmatprep.mubr.f32.mxu0 0.0
    %187 = vmatmul.mubr.f32.gmra.mxu0 %v75
    %v188 = vpop.f32.mrf.mxu0
    %v189 = vadd.f32 %v71, %v188
    %v190 = vpop.f32.mrf.mxu0
    %191 = vmatprep.mubr.f32.mxu0 0.0
    %192 = vmatmul.mubr.f32.gmra.mxu0 %v78
    %v193 = vpop.f32.mrf.mxu0
    %v194 = vadd.f32 %v71, %v193
    %v195 = vpop.f32.mrf.mxu0
    %196 = vmatprep.mubr.f32.mxu0 0.0
    %197 = vmatmul.mubr.f32.gmra.mxu0 %v81
    %v198 = vpop.f32.mrf.mxu0
    %v199 = vadd.f32 %v71, %v198
    %v200 = vpop.f32.mrf.mxu0
    %201 = vmatprep.mubr.f32.mxu0 0.0
    %202 = vmatmul.mubr.f32.gmra.mxu0 %v84
    %v203 = vpop.f32.mrf.mxu0
    %v204 = vadd.f32 %v71, %v203
    %v205 = vpop.f32.mrf.mxu0
    %206 = vmatprep.mubr.f32.mxu0 0.0
    %207 = vmatmul.mubr.f32.gmra.mxu0 %v87
    %v208 = vpop.f32.mrf.mxu0
    %v209 = vadd.f32 %v71, %v208
    %v210 = vpop.f32.mrf.mxu0
    %211 = vmatprep.mubr.f32.mxu0 0.0
    %212 = vmatmul.mubr.f32.gmra.mxu0 %v90
    %v213 = vpop.f32.mrf.mxu0
    %v214 = vadd.f32 %v71, %v213
    %v215 = vpop.f32.mrf.mxu0
    %216 = vmatprep.mubr.f32.mxu0 0.0
    %217 = vmatmul.mubr.f32.gmra.mxu0 %v93
    %v218 = vpop.f32.mrf.mxu0
    %v219 = vadd.f32 %v71, %v218
    %v220 = vpop.f32.mrf.mxu0
    %221 = vmatprep.mubr.f32.mxu0 0.0
    %222 = vmatmul.mubr.f32.gmra.mxu0 %v96
    %v223 = vpop.f32.mrf.mxu0
    %v224 = vadd.f32 %v71, %v223
    %v225 = vpop.f32.mrf.mxu0
    %226 = vmatprep.mubr.f32.mxu0 0.0
    %227 = vmatmul.mubr.f32.gmra.mxu0 %v99
    %v228 = vpop.f32.mrf.mxu0
    %v229 = vadd.f32 %v71, %v228
    %v230 = vpop.f32.mrf.mxu0
    %231 = vmatprep.mubr.f32.mxu0 0.0
    %232 = vmatmul.mubr.f32.gmra.mxu0 %v102
    %v233 = vpop.f32.mrf.mxu0
    %v234 = vadd.f32 %v71, %v233
    %v235 = vpop.f32.mrf.mxu0
    %236 = vmatprep.mubr.f32.mxu0 0.0
    %237 = vmatmul.mubr.f32.gmra.mxu0 %v105
    %v238 = vpop.f32.mrf.mxu0
    %v239 = vadd.f32 %v71, %v238
    %v240 = vpop.f32.mrf.mxu0
    %241 = vmatprep.mubr.f32.mxu0 0.0
    %242 = vmatmul.mubr.f32.gmra.mxu0 %v108
    %v243 = vpop.f32.mrf.mxu0
    %v244 = vadd.f32 %v71, %v243
    %v245 = vpop.f32.mrf.mxu0
    %246 = vmatprep.mubr.f32.mxu0 0.0
    %247 = vmatmul.mubr.f32.gmra.mxu0 %v111
    %v248 = vpop.f32.mrf.mxu0
    %v249 = vadd.f32 %v71, %v248
    %v250 = vpop.f32.mrf.mxu0
    %251 = vmatprep.mubr.f32.mxu0 0.0
    %252 = vmatmul.mubr.f32.gmra.mxu0 %v114
    %v253 = vpop.f32.mrf.mxu0
    %v254 = vadd.f32 %v71, %v253
    %v255 = vpop.f32.mrf.mxu0
    %256 = vmatprep.mubr.f32.mxu0 0.0
    %257 = vmatmul.mubr.f32.gmra.mxu0 %v117
    %v258 = vpop.f32.mrf.mxu0
    %v259 = vadd.f32 %v71, %v258
    %v260 = vpop.f32.mrf.mxu0
    %261 = vmatprep.mubr.f32.mxu0 0.0
    %262 = vmatmul.mubr.f32.gmra.mxu0 %v120
    %v263 = vpop.f32.mrf.mxu0
    %v264 = vadd.f32 %v71, %v263
    %v265 = vpop.f32.mrf.mxu0
    %266 = vdwg.mxu0
    %267 = vst [vmem:[#allocation7] sm:$0xff] %v189
    %268 = vst [vmem:[#allocation7 + $0x8] sm:$0xff] %v194
    %269 = vst [vmem:[#allocation7 + $0x10] sm:$0xff] %v199
    %270 = vst [vmem:[#allocation7 + $0x18] sm:$0xff] %v204
    %271 = vst [vmem:[#allocation7 + $0x20] sm:$0xff] %v209
    %272 = vst [vmem:[#allocation7 + $0x28] sm:$0xff] %v214
    %273 = vst [vmem:[#allocation7 + $0x30] sm:$0xff] %v219
    %274 = vst [vmem:[#allocation7 + $0x38] sm:$0xff] %v224
    %275 = vst [vmem:[#allocation7 + $0x40] sm:$0xff] %v229
    %276 = vst [vmem:[#allocation7 + $0x48] sm:$0xff] %v234
    %277 = vst [vmem:[#allocation7 + $0x50] sm:$0xff] %v239
    %278 = vst [vmem:[#allocation7 + $0x58] sm:$0xff] %v244
    %279 = vst [vmem:[#allocation7 + $0x60] sm:$0xff] %v249
    %280 = vst [vmem:[#allocation7 + $0x68] sm:$0xff] %v254
    %281 = vst [vmem:[#allocation7 + $0x70] sm:$0xff] %v259
    %282 = vst [vmem:[#allocation7 + $0x78] sm:$0xff] %v264
    %vm283 = vweird.f32 %v189
    %vm284 = vweird.f32 %v194
    %vm285 = vweird.f32 %v199
    %vm286 = vweird.f32 %v204
    %vm287 = vweird.f32 %v209
    %vm288 = vweird.f32 %v214
    %vm289 = vweird.f32 %v219
    %vm290 = vweird.f32 %v224
    %vm291 = vweird.f32 %v229
    %vm292 = vweird.f32 %v234
    %vm293 = vweird.f32 %v239
    %vm294 = vweird.f32 %v244
    %vm295 = vweird.f32 %v249
    %vm296 = vweird.f32 %v254
    %vm297 = vweird.f32 %v259
    %vm298 = vweird.f32 %v264
    %v299 = vsel %vm283, 1, 0
    %v300 = vsel %vm284, 1, 0
    %v301 = vsel %vm285, 1, 0
    %v302 = vsel %vm286, 1, 0
    %v303 = vsel %vm287, 1, 0
    %v304 = vsel %vm288, 1, 0
    %v305 = vsel %vm289, 1, 0
    %v306 = vsel %vm290, 1, 0
    %v307 = vsel %vm291, 1, 0
    %v308 = vsel %vm292, 1, 0
    %v309 = vsel %vm293, 1, 0
    %v310 = vsel %vm294, 1, 0
    %v311 = vsel %vm295, 1, 0
    %v312 = vsel %vm296, 1, 0
    %v313 = vsel %vm297, 1, 0
    %v314 = vsel %vm298, 1, 0
    %v315 = vcvt.s32.f32 %v299
    %v316 = vcvt.s32.f32 %v300
    %v317 = vcvt.s32.f32 %v301
    %v318 = vcvt.s32.f32 %v302
    %v319 = vcvt.s32.f32 %v303
    %v320 = vcvt.s32.f32 %v304
    %v321 = vcvt.s32.f32 %v305
    %v322 = vcvt.s32.f32 %v306
    %v323 = vcvt.s32.f32 %v307
    %v324 = vcvt.s32.f32 %v308
    %v325 = vcvt.s32.f32 %v309
    %v326 = vcvt.s32.f32 %v310
    %v327 = vcvt.s32.f32 %v311
    %v328 = vcvt.s32.f32 %v312
    %v329 = vcvt.s32.f32 %v313
    %v330 = vcvt.s32.f32 %v314
    %331 = vmax.xlane.f32.xlu0 %v315
    %v332 = vpop.xlane.xlu0 %331
    %333 = vmax.xlane.f32.xlu0 %v316
    %v334 = vpop.xlane.xlu0 %333
    %335 = vmax.xlane.f32.xlu0 %v317
    %v336 = vpop.xlane.xlu0 %335
    %337 = vmax.xlane.f32.xlu0 %v318
    %v338 = vpop.xlane.xlu0 %337
    %339 = vmax.xlane.f32.xlu0 %v319
    %v340 = vpop.xlane.xlu0 %339
    %341 = vmax.xlane.f32.xlu0 %v320
    %v342 = vpop.xlane.xlu0 %341
    %343 = vmax.xlane.f32.xlu0 %v321
    %v344 = vpop.xlane.xlu0 %343
    %345 = vmax.xlane.f32.xlu0 %v322
    %v346 = vpop.xlane.xlu0 %345
    %347 = vmax.xlane.f32.xlu0 %v323
    %v348 = vpop.xlane.xlu0 %347
    %349 = vmax.xlane.f32.xlu0 %v324
    %v350 = vpop.xlane.xlu0 %349
    %351 = vmax.xlane.f32.xlu0 %v325
    %v352 = vpop.xlane.xlu0 %351
    %353 = vmax.xlane.f32.xlu0 %v326
    %v354 = vpop.xlane.xlu0 %353
    %355 = vmax.xlane.f32.xlu0 %v327
    %v356 = vpop.xlane.xlu0 %355
    %357 = vmax.xlane.f32.xlu0 %v328
    %v358 = vpop.xlane.xlu0 %357
    %359 = vmax.xlane.f32.xlu0 %v329
    %v360 = vpop.xlane.xlu0 %359
    %361 = vmax.xlane.f32.xlu0 %v330
    %v362 = vpop.xlane.xlu0 %361
    %vm363 = vcmask 7168
    %v365 = vsel %vm363, 1.0, 0
    %v368 = vsel %vm363, %v332, 0
    %v371 = vsel %vm363, %v334, 0
    %v374 = vsel %vm363, %v336, 0
    %v377 = vsel %vm363, %v338, 0
    %v380 = vsel %vm363, %v340, 0
    %v383 = vsel %vm363, %v342, 0
    %v386 = vsel %vm363, %v344, 0
    %v389 = vsel %vm363, %v346, 0
    %v392 = vsel %vm363, %v348, 0
    %v395 = vsel %vm363, %v350, 0
    %v398 = vsel %vm363, %v352, 0
    %v401 = vsel %vm363, %v354, 0
    %v404 = vsel %vm363, %v356, 0
    %v407 = vsel %vm363, %v358, 0
    %v410 = vsel %vm363, %v360, 0
    %v413 = vsel %vm363, %v362, 0
    %415 = vmatprep.subr.mxu0 0.0
    %416 = vmatpush1.xpose.msra.mxu0 %v413
    %417 = vmatprep.subr.mxu0 0.0
    %418 = vmatpush1.xpose.msra.mxu0 %v410
    %419 = vmatprep.subr.mxu0 0.0
    %420 = vmatpush1.xpose.msra.mxu0 %v407
    %421 = vmatprep.subr.mxu0 0.0
    %422 = vmatpush1.xpose.msra.mxu0 %v404
    %423 = vmatprep.subr.mxu0 0.0
    %424 = vmatpush1.xpose.msra.mxu0 %v401
    %425 = vmatprep.subr.mxu0 0.0
    %426 = vmatpush1.xpose.msra.mxu0 %v398
    %427 = vmatprep.subr.mxu0 0.0
    %428 = vmatpush1.xpose.msra.mxu0 %v395
    %429 = vmatprep.subr.mxu0 0.0
    %430 = vmatpush1.xpose.msra.mxu0 %v392
    %431 = vmatprep.subr.mxu0 0.0
    %432 = vmatpush1.xpose.msra.mxu0 %v389
    %433 = vmatprep.subr.mxu0 0.0
    %434 = vmatpush1.xpose.msra.mxu0 %v386
    %435 = vmatprep.subr.mxu0 0.0
    %436 = vmatpush1.xpose.msra.mxu0 %v383
    %437 = vmatprep.subr.mxu0 0.0
    %438 = vmatpush1.xpose.msra.mxu0 %v380
    %439 = vmatprep.subr.mxu0 0.0
    %440 = vmatpush1.xpose.msra.mxu0 %v377
    %441 = vmatprep.subr.mxu0 0.0
    %442 = vmatpush1.xpose.msra.mxu0 %v374
    %443 = vmatprep.subr.mxu0 0.0
    %444 = vmatpush1.xpose.msra.mxu0 %v371
    %445 = vmatprep.subr.mxu0 0.0
    %446 = vmatpush1.xpose.msra.mxu0 %v368
    %447 = vmatprep.subr.mxu0 0.0
    %448 = vmatpush2.xpose.msra.mxu0 0.0
    %449 = vmatprep.subr.mxu0 0.0
    %450 = vmatpush2.xpose.msra.mxu0 0.0
    %451 = vmatprep.subr.mxu0 0.0
    %452 = vmatpush2.xpose.msra.mxu0 0.0
    %453 = vmatprep.subr.mxu0 0.0
    %454 = vmatpush2.xpose.msra.mxu0 0.0
    %455 = vmatprep.subr.mxu0 0.0
    %456 = vmatpush2.xpose.msra.mxu0 0.0
    %457 = vmatprep.subr.mxu0 0.0
    %458 = vmatpush2.xpose.msra.mxu0 0.0
    %459 = vmatprep.subr.mxu0 0.0
    %460 = vmatpush2.xpose.msra.mxu0 0.0
    %461 = vmatprep.subr.mxu0 0.0
    %462 = vmatpush2.xpose.msra.mxu0 0.0
    %463 = vmatprep.subr.mxu0 0.0
    %464 = vmatpush2.xpose.msra.mxu0 0.0
    %465 = vmatprep.subr.mxu0 0.0
    %466 = vmatpush2.xpose.msra.mxu0 0.0
    %467 = vmatprep.subr.mxu0 0.0
    %468 = vmatpush2.xpose.msra.mxu0 0.0
    %469 = vmatprep.subr.mxu0 0.0
    %470 = vmatpush2.xpose.msra.mxu0 0.0
    %471 = vmatprep.subr.mxu0 0.0
    %472 = vmatpush2.xpose.msra.mxu0 0.0
    %473 = vmatprep.subr.mxu0 0.0
    %474 = vmatpush2.xpose.msra.mxu0 0.0
    %475 = vmatprep.subr.mxu0 0.0
    %476 = vmatpush2.xpose.msra.mxu0 0.0
    %477 = vmatprep.subr.mxu0 0.0
    %478 = vmatpush2.xpose.msra.mxu0 0.0
    %479 = vmatprep.mubr.f32.mxu0 0.0
    %480 = vmatmul.mubr.f32.gmra.mxu0 %v365
    %v481 = vpop.f32.mrf.mxu0
    %v482 = vadd.f32 0.0, %v481
    %v483 = vpop.f32.mrf.mxu0
    %484 = vdwg.mxu0
    %vm485 = vcmp.eq.f32.partialorder %v482, 0.0
    %v486 = vsel %vm485, 1, 0
    %p487 = scmp.eq.s32.totalorder 0, 0
    // Predicated region
    $region22: #{tpu_custom_call.1} parent=1 // pred_check
      %p488 = pneg %p487
    $region23: #{tpu_custom_call.1} parent=1 // pred_check_branch
      %490 = sbr.rel (%p488) target = $region25
    $region24: #{tpu_custom_call.1} parent=1 // pred_region
      %491 = vst [vmem:[#allocation8] sm:$0x1] 1
    $region25: #{tpu_custom_call.1} parent=1 // pred_fallthru
      _
    %v492 = vld [vmem:[#allocation8] sm:$0x1]
    %v493 = vmul.u32 %v492, %v486
    %494 = vst [vmem:[#allocation8] sm:$0x1] %v493
    // Predicated region
    $region26: #{tpu_custom_call.1} parent=1 // pred_check
      _
    $region27: #{tpu_custom_call.1} parent=1 // pred_check_branch
      %496 = sbr.rel (0) target = $region29
    $region28: #{tpu_custom_call.1} parent=1 // pred_region
      %s498 = ssub.s32 2048, 128
      %499 = vsyncadd [#allocation4], %s498
      %s500 = sshll.u32 [#allocation7], 4
      %s501 = int_to_ptr.vmem [resolvable:$true] %s500
      %506 = dma.vmem_to_hbm [thread:$0]  %s501, 128, %s3, [#allocation4], 128, 128, 8
    $region29: #{tpu_custom_call.1} parent=1 // pred_fallthru
      _
    // Predicated region
    $region30: #{tpu_custom_call.1} parent=1 // pred_check
      _
    $region31: #{tpu_custom_call.1} parent=1 // pred_check_branch
      %508 = sbr.rel (0) target = $region33
    $region32: #{tpu_custom_call.1} parent=1 // pred_region
      %s510 = ssub.s32 16, 16
      %511 = vsyncadd [#allocation9], %s510
      %s513 = sshll.u32 [#allocation8], 4
      %s514 = int_to_ptr.vmem [resolvable:$true] %s513
      %516 = dma.vmem_to_hbm [thread:$0]  %s514, 16, %s4, [#allocation9]
    $region33: #{tpu_custom_call.1} parent=1 // pred_fallthru
      _
    // Predicated region
    $region34: #{tpu_custom_call.1} parent=1 // pred_check
      _
    $region35: #{tpu_custom_call.1} parent=1 // pred_check_branch
      %518 = sbr.rel (0) target = $region37
    $region36: #{tpu_custom_call.1} parent=1 // pred_region
      %519 = dma.done [#allocation4], 2048
    $region37: #{tpu_custom_call.1} parent=1 // pred_fallthru
      _
    // Predicated region
    $region38: #{tpu_custom_call.1} parent=1 // pred_check
      _
    $region39: #{tpu_custom_call.1} parent=1 // pred_check_branch
      %521 = sbr.rel (0) target = $region41
    $region40: #{tpu_custom_call.1} parent=1 // pred_region
      %522 = dma.done [#allocation9], 16
    $region41: #{tpu_custom_call.1} parent=1 // pred_fallthru
      _
    %523 = vsyncpa [#allocation3], 1
    %524 = vsyncpa [#allocation6], 1
    %525 = vsyncpa [#allocation4], 1
    %526 = vsyncpa [#allocation9], 1

</llo_original>
